<compile_context>
chip_gen: v6e
topology: v6e:2x2x1
jax: 0.10.0
libtpu: 0.0.40
codegen_flags: <defaults>
</compile_context>

<pallas_src>
import functools
import math

import numpy as np

import jax
import jax.numpy as jnp
from jax.experimental import pallas as pl
from jax.experimental.pallas import tpu as pltpu


_JNP_FUNCTION_FROM_ONNX_TYPE = {
    "Add": jnp.add,
    "Sub": jnp.subtract,
    "Mul": jnp.multiply,
    "Div": jnp.divide,
}

_LANES = 128
# Target for the double-buffered operand working set (2 bufs x 3 arrays).
_VMEM_BUDGET = 12 * 1024 * 1024
_VMEM_LIMIT = 32 * 1024 * 1024
# Only split a single-block problem into >=2 grid steps (v7x 2-TC sharding)
# when the total traffic is at least this big; below it, per-step overhead
# dominates and one step is faster.
_SPLIT_BYTES = 1 * 1024 * 1024


def _binary_kernel(x_ref, y_ref, o_ref, *, op, reverse, compute_dtype):
    """Binary elementwise op on one VMEM tile; y broadcasts against x.

    Dtype promotion is done here (VPU casts are free filler in a mem-bound
    kernel), so HBM traffic uses the original input dtypes.
    """
    x = x_ref[...].astype(compute_dtype)
    y = y_ref[...].astype(compute_dtype)
    res = op(y, x) if reverse else op(x, y)
    o_ref[...] = res.astype(o_ref.dtype)


def old_style_broadcast(first, second, axis):
    """ONNX-v6 style broadcast: align `second`'s dims starting at `axis` of
    `first`, padding with size-1 dims on the right."""
    rank = first.ndim
    axis = axis + rank if axis < 0 else axis
    shape = [1] * axis + list(second.shape)
    shape = shape + [1] * (rank - len(shape))
    return second.reshape(shape)


def _round_up(x, m):
    return ((x + m - 1) // m) * m


def _sublane_multiple(dtype):
    # f32/i32 -> 8, bf16/f16 -> 16, int8/fp8 -> 32 (sub-32-bit packs sublanes)
    return max(8, 32 // np.dtype(dtype).itemsize)


def _compiler_params(n_grid_dims):
    return pltpu.CompilerParams(
        dimension_semantics=("parallel",) * n_grid_dims,
        vmem_limit_bytes=_VMEM_LIMIT)


def _choose_tm(rows, bytes_per_row, sublane, tile_rows):
    max_rows = max(sublane, _VMEM_BUDGET // (2 * max(1, bytes_per_row)))
    tm = min(rows, tile_rows, max_rows)
    tm = max(sublane, (tm // sublane) * sublane)
    # Prefer >= 2 grid steps (so "parallel" can shard across 2 TCs on v7x),
    # but only when the problem is big enough to amortize per-step overhead.
    if (tm >= rows and rows >= 2 * sublane
            and rows * bytes_per_row >= _SPLIT_BYTES):
        tm = max(sublane, (pl.cdiv(rows, 2) // sublane) * sublane)
    return tm


def _flat_lane_view(x, total):
    """Row-major flat view as (rows, 128).  Pads only the (<128-element) tail
    when total is not a multiple of 128; otherwise it is a free reshape."""
    rows = pl.cdiv(total, _LANES)
    flat = x.reshape(-1)
    pad = rows * _LANES - total
    if pad:
        # Pad with 1 so a padded divisor never divides by zero (those lanes
        # are discarded anyway).
        flat = jnp.pad(flat, (0, pad), constant_values=1)
    return flat.reshape(rows, _LANES), rows, pad


def _call_ew(kernel, arrays, in_specs, out_struct, out_spec, grid):
    return pl.pallas_call(
        kernel,
        out_shape=out_struct,
        grid_spec=pltpu.PrefetchScalarGridSpec(
            num_scalar_prefetch=0,
            grid=grid,
            in_specs=in_specs,
            out_specs=out_spec),
        compiler_params=_compiler_params(len(grid)),
    )(*arrays)


def _path_full(a, b, out_shape, out_dtype, op, tile_rows):
    """Both operands already have full output size: flat (rows, 128) tiling."""
    total = max(1, math.prod(out_shape))
    a2, rows, pad = _flat_lane_view(a, total)
    b2, _, _ = _flat_lane_view(b, total)
    sub = max(_sublane_multiple(d) for d in (a.dtype, b.dtype, out_dtype))
    bpr = _LANES * (np.dtype(a.dtype).itemsize + np.dtype(b.dtype).itemsize
                    + np.dtype(out_dtype).itemsize)
    tm = _choose_tm(rows, bpr, sub, tile_rows)
    grid = (pl.cdiv(rows, tm),)
    kern = functools.partial(_binary_kernel, op=op, reverse=False,
                             compute_dtype=out_dtype)
    out = _call_ew(
        kern, (a2, b2),
        [pl.BlockSpec((tm, _LANES), lambda i: (i, 0)),
         pl.BlockSpec((tm, _LANES), lambda i: (i, 0))],
        jax.ShapeDtypeStruct((rows, _LANES), out_dtype),
        pl.BlockSpec((tm, _LANES), lambda i: (i, 0)),
        grid)
    out = out.reshape(-1)
    if pad:
        out = out[:total]
    return out.reshape(out_shape)


def _path_scalar(big, small, out_shape, out_dtype, op, reverse, tile_rows):
    """One operand is a single element: keep it as an untiled (1, 1) block."""
    total = max(1, math.prod(out_shape))
    big2, rows, pad = _flat_lane_view(big, total)
    small2 = small.reshape(1, 1)
    sub = max(_sublane_multiple(d) for d in (big.dtype, out_dtype))
    bpr = _LANES * (np.dtype(big.dtype).itemsize + np.dtype(out_dtype).itemsize)
    tm = _choose_tm(rows, bpr, sub, tile_rows)
    grid = (pl.cdiv(rows, tm),)
    kern = functools.partial(_binary_kernel, op=op, reverse=reverse,
                             compute_dtype=out_dtype)
    out = _call_ew(
        kern, (big2, small2),
        [pl.BlockSpec((tm, _LANES), lambda i: (i, 0)),
         pl.BlockSpec((1, 1), lambda i: (0, 0))],
        jax.ShapeDtypeStruct((rows, _LANES), out_dtype),
        pl.BlockSpec((tm, _LANES), lambda i: (i, 0)),
        grid)
    out = out.reshape(-1)
    if pad:
        out = out[:total]
    return out.reshape(out_shape)


def _broadcast_plan(out_shape, small_shape):
    """Decompose out_shape into (O, M, I): the small operand varies only over
    the contiguous middle M dims.  Returns None if the varying dims are not
    contiguous (rare -> materialized-broadcast fallback)."""
    rank = len(out_shape)
    aligned = (1,) * (rank - len(small_shape)) + tuple(small_shape)
    O = M = I = 1
    phase = 0  # 0 leading broadcast dims, 1 varying run, 2 trailing broadcast
    for od, sd in zip(out_shape, aligned):
        if od == 1:
            continue
        if sd == od:
            if phase == 2:
                return None
            phase = 1
            M *= od
        else:
            if phase == 1:
                phase = 2
            if phase == 0:
                O *= od
            else:
                I *= od
    if M == 1:
        return None
    return O, M, I


def _path_bcast(big, small, out_shape, out_dtype, op, reverse, O, M, I,
                tile_rows):
    """Broadcast the small operand inside the kernel instead of materializing
    it at full size in HBM (saves ~1/3 of HBM traffic for bias-like adds).
    VMEM accounting uses sublane/lane-padded block sizes."""
    itb = np.dtype(big.dtype).itemsize
    ito = np.dtype(out_dtype).itemsize
    its = np.dtype(small.dtype).itemsize
    sub = max(_sublane_multiple(d) for d in (big.dtype, out_dtype))
    kern = functools.partial(_binary_kernel, op=op, reverse=reverse,
                             compute_dtype=out_dtype)

    if I == 1:
        # out[o, m] = op(big[o, m], small[m]): broadcast along sublanes.
        m_lane = _round_up(M, _LANES)                  # lane-padded width
        row_bytes = m_lane * (itb + ito)
        small_bytes = sub * m_lane * its               # (1, M) block, padded
        if 2 * (sub * row_bytes + small_bytes) > _VMEM_BUDGET:
            return None
        big2 = big.reshape(O, M)
        small2 = small.reshape(1, M)
        tm = _choose_tm(O, row_bytes, sub, tile_rows)
        grid = (pl.cdiv(O, tm),)
        out = _call_ew(
            kern, (big2, small2),
            [pl.BlockSpec((tm, M), lambda i: (i, 0)),
             pl.BlockSpec((1, M), lambda i: (0, 0))],
            jax.ShapeDtypeStruct((O, M), out_dtype),
            pl.BlockSpec((tm, M), lambda i: (i, 0)),
            grid)
        return out.reshape(out_shape)

    # out[o, m, i] = op(big[o, m, i], small[m]): broadcast along lanes (+O).
    m_sub = _round_up(M, sub)                          # sublane-padded rows
    col_bytes = m_sub * (itb + ito)                    # per lane column of a block
    max_ti = _VMEM_BUDGET // (2 * max(1, col_bytes))
    if I <= _LANES:
        if max_ti < I:
            return None
        ti = I                                         # full last dim (layout-exempt)
    else:
        if max_ti < _LANES:
            return None
        ti = I if max_ti >= I else (max_ti // _LANES) * _LANES
    n_i = pl.cdiv(I, ti)
    to = 1
    if n_i == 1:
        # Whole last dim fits in one block: also tile a few O rows per step.
        block_bytes = max(1, m_sub * _round_up(ti, _LANES) * (itb + ito))
        to = max(1, min(O, _VMEM_BUDGET // (2 * block_bytes)))
        if to >= O and O >= 2 and O * block_bytes >= _SPLIT_BYTES:
            to = max(1, pl.cdiv(O, 2))                 # >=2 steps for big inputs
    grid = (pl.cdiv(O, to), n_i)
    big3 = big.reshape(O, M, I)
    small3 = small.reshape(1, M, 1)
    out = _call_ew(
        kern, (big3, small3),
        [pl.BlockSpec((to, M, ti), lambda o, i: (o, 0, i)),
         pl.BlockSpec((1, M, 1), lambda o, i: (0, 0, 0))],
        jax.ShapeDtypeStruct((O, M, I), out_dtype),
        pl.BlockSpec((to, M, ti), lambda o, i: (o, 0, i)),
        grid)
    return out.reshape(out_shape)


def onnx_binary_math(first, second, operation_type, broadcast=None, axis=None,
                     tile_rows=4096):
    """Forward pass of OnnxBinaryMathOperation_DI."""
    op = _JNP_FUNCTION_FROM_ONNX_TYPE[operation_type]
    first = jnp.asarray(first)
    second = jnp.asarray(second)

    if broadcast == 1 and axis is not None:
        second = old_style_broadcast(first, second, axis)

    out_shape = jnp.broadcast_shapes(first.shape, second.shape)
    out_dtype = np.dtype(jnp.result_type(first.dtype, second.dtype))
    if operation_type == "Div" and not jnp.issubdtype(out_dtype, jnp.floating):
        # torch operator.truediv promotes integer/bool inputs to float.
        out_dtype = np.dtype(jnp.float32)

    total = math.prod(out_shape)
    if total == 0:
        return jnp.zeros(out_shape, out_dtype)

    size_f, size_s = first.size, second.size

    if size_f == total and size_s == total:
        return _path_full(first, second, out_shape, out_dtype, op, tile_rows)

    if size_f == total or size_s == total:
        if size_f == total:
            big, small, reverse = first, second, False
        else:
            big, small, reverse = second, first, True
        if small.size == 1:
            return _path_scalar(big, small, out_shape, out_dtype, op, reverse,
                                tile_rows)
        plan = _broadcast_plan(out_shape, small.shape)
        if plan is not None:
            res = _path_bcast(big, small, out_shape, out_dtype, op, reverse,
                              *plan, tile_rows)
            if res is not None:
                return res

    # TODO(synk): rare broadcast patterns (both operands broadcast, or the
    # small operand varying over non-contiguous dims) fall back to a
    # materialized broadcast before the flat elementwise kernel.
    a = jnp.broadcast_to(first, out_shape)
    b = jnp.broadcast_to(second, out_shape)
    return _path_full(a, b, out_shape, out_dtype, op, tile_rows)


if __name__ == "__main__":
    key = jax.random.PRNGKey(0)
    k1, k2, k3, k4, k5 = jax.random.split(key, 5)

    # NCHW input, per-channel bias via ONNX old-style broadcast (axis=1).
    x = jax.random.normal(k1, (2, 4, 16, 16), dtype=jnp.float32)
    bias = jax.random.normal(k2, (4,), dtype=jnp.float32)
    y_add = jax.block_until_ready(
        onnx_binary_math(x, bias, "Add", broadcast=1, axis=1))
    ref_add = x + bias.reshape(1, 4, 1, 1)

    # Div with a same-shaped second operand (no broadcast).
    denom = jax.random.normal(k3, (2, 4, 16, 16), dtype=jnp.float32) + 3.0
    y_div = jax.block_until_ready(onnx_binary_math(x, denom, "Div"))
    ref_div = x / denom

    # Mul by a scalar second operand (numpy-style broadcast).
    scale = jnp.asarray(2.5, dtype=jnp.float32)
    y_mul = jax.block_until_ready(onnx_binary_math(x, scale, "Mul"))
    ref_mul = x * scale

    # Sub with a trailing-dim bias (seq=8, hidden=32): row-broadcast path.
    x2 = jax.random.normal(k4, (8, 32), dtype=jnp.float32)
    b2 = jax.random.normal(k5, (32,), dtype=jnp.float32)
    y_sub = jax.block_until_ready(onnx_binary_math(x2, b2, "Sub"))
    ref_sub = x2 - b2

    assert y_add.shape == ref_add.shape and y_add.dtype == ref_add.dtype
    assert y_div.shape == ref_div.shape and y_div.dtype == ref_div.dtype
    assert jnp.allclose(y_add, ref_add, atol=1e-6, rtol=1e-6)
    assert jnp.allclose(y_div, ref_div, atol=1e-6, rtol=1e-6)
    assert jnp.allclose(y_mul, ref_mul, atol=1e-6, rtol=1e-6)
    assert jnp.allclose(y_sub, ref_sub, atol=1e-6, rtol=1e-6)

    print("KERNEL_OK")
</pallas_src>

<mosaic_0001>
module attributes {stable_mosaic.version = 11 : i64} {
  func.func @_binary_kernel(%arg0: i32, %arg1: i32, %arg2: memref<2x4x256xf32, #tpu.memory_space<vmem>>, %arg3: memref<1x4x1xf32, #tpu.memory_space<vmem>>, %arg4: memref<2x4x256xf32, #tpu.memory_space<vmem>>) attributes {dimension_semantics = [#tpu.dimension_semantics<parallel>, #tpu.dimension_semantics<parallel>], iteration_bounds = array<i64: 1, 1>, scalar_prefetch = 0 : i64, scratch_operands = 0 : i64, tpu.core_type = #tpu.core_type<tc>, window_params = [{transform_indices = @transform_0, window_bounds = array<i64: 2, 4, 256>}, {pipeline_mode = #tpu.pipeline_mode<synchronous>, transform_indices = @transform_1, window_bounds = array<i64: 1, 4, 1>}, {transform_indices = @transform_2, window_bounds = array<i64: 2, 4, 256>}]} {
    %c0 = arith.constant 0 : index
    %c0_0 = arith.constant 0 : index
    %c0_1 = arith.constant 0 : index
    %0 = vector.load %arg2[%c0, %c0_0, %c0_1] : memref<2x4x256xf32, #tpu.memory_space<vmem>>, vector<2x4x256xf32>
    %c0_2 = arith.constant 0 : index
    %c0_3 = arith.constant 0 : index
    %c0_4 = arith.constant 0 : index
    %1 = vector.load %arg3[%c0_2, %c0_3, %c0_4] : memref<1x4x1xf32, #tpu.memory_space<vmem>>, vector<1x4x1xf32>
    %2 = vector.broadcast %1 : vector<1x4x1xf32> to vector<2x4x256xf32>
    %3 = arith.addf %0, %2 : vector<2x4x256xf32>
    %c0_5 = arith.constant 0 : index
    %c0_6 = arith.constant 0 : index
    %c0_7 = arith.constant 0 : index
    %4 = vector.load %arg4[%c0_5, %c0_6, %c0_7] : memref<2x4x256xf32, #tpu.memory_space<vmem>>, vector<2x4x256xf32>
    tpu.vector_store %arg4[%c0_5, %c0_6, %c0_7], %3 {strides = array<i32>} : memref<2x4x256xf32, #tpu.memory_space<vmem>>, vector<2x4x256xf32>,
    return
  }
  func.func @transform_0(%arg0: i32, %arg1: i32) -> (i32, i32, i32) {
    %c0_i32 = arith.constant 0 : i32
    %c0_i32_0 = arith.constant 0 : i32
    return %arg0, %c0_i32, %arg1 : i32, i32, i32
  }
  func.func @transform_1(%arg0: i32, %arg1: i32) -> (i32, i32, i32) {
    %c0_i32 = arith.constant 0 : i32
    %c0_i32_0 = arith.constant 0 : i32
    %c0_i32_1 = arith.constant 0 : i32
    %c0_i32_2 = arith.constant 0 : i32
    return %c0_i32, %c0_i32_0, %c0_i32_1 : i32, i32, i32
  }
  func.func @transform_2(%arg0: i32, %arg1: i32) -> (i32, i32, i32) {
    %c0_i32 = arith.constant 0 : i32
    %c0_i32_0 = arith.constant 0 : i32
    return %arg0, %c0_i32, %arg1 : i32, i32, i32
  }
}

</mosaic_0001>

<llo_original>
// kernel: tpu_custom_call.1
$region0: #{tpu_custom_call.1}
  #allocation0 [shape = 'u32[]', space=smem, size = 0x4, offset = 0x4, fixed_abs, tag = 'smem constant byte address 0x4 - core index']
  #allocation1 [shape = 'u32[144,128]{1,0:T(1,128)}', space=vmem, size = 0x12000, scoped, tag = 'internal scratch']
  %s0 = inlined_call_operand.hbm [shape: f32[2,4,256], index: 0, kind: input, shape index: {}]
  %s1 = inlined_call_operand.vmem [shape: f32[1,4,1], index: 1, kind: input, shape index: {}]
  %s2 = inlined_call_operand.hbm [shape: f32[2,4,256], index: 2, kind: output, shape index: {}]
  %s3 = sld [smem:[#allocation0]]
  $region22: #{tpu_custom_call.1} parent=0
    _
  %s5 = ssub.s32 1, %s3
  %s6 = scalar_select 0, %s5, %s3
  $region1: #{tpu_custom_call.1} parent=0
    #allocation2 [shape = 'u8[8192]{0}', space=vmem, size = 0x2000, scoped, tag = 'input window, operand 0, single buffered']
    #allocation3 [shape = 's32[1]{0}', space=sflag, size = 0x4, scoped, tag = 'scoped memory for tpu_custom_call.1']
    #allocation4 [shape = 's32[1]{0}', space=sflag, size = 0x4, scoped, tag = 'scoped memory for tpu_custom_call.1']
    #allocation5 [shape = 'u8[8192]{0}', space=vmem, size = 0x2000, scoped, tag = 'output window, operand 0, single buffered']
    %7 = vsyncpa [#allocation3], 0
    %8 = vsyncpa [#allocation4], 0
    // Predicated region
    $region2: #{tpu_custom_call.1} parent=1 // pred_check
      _
    $region3: #{tpu_custom_call.1} parent=1 // pred_check_branch
      %10 = sbr.rel (0) target = $region5
    $region4: #{tpu_custom_call.1} parent=1 // pred_region
      %s12 = ssub.s32 256, 256
      %13 = vsyncadd [#allocation3], %s12
      %s14 = sshll.u32 [#allocation2], 4
      %s15 = int_to_ptr.vmem [resolvable:$true] %s14
      %20 = dma.hbm_to_vmem [thread:$0]  %s0, 256, %s15, [#allocation3], 128, 128, 8
    $region5: #{tpu_custom_call.1} parent=1 // pred_fallthru
      _
    // Predicated region
    $region6: #{tpu_custom_call.1} parent=1 // pred_check
      _
    $region7: #{tpu_custom_call.1} parent=1 // pred_check_branch
      %22 = sbr.rel (0) target = $region9
    $region8: #{tpu_custom_call.1} parent=1 // pred_region
      _
    $region9: #{tpu_custom_call.1} parent=1 // pred_fallthru
      _
    // Predicated region
    $region10: #{tpu_custom_call.1} parent=1 // pred_check
      _
    $region11: #{tpu_custom_call.1} parent=1 // pred_check_branch
      %24 = sbr.rel (0) target = $region13
    $region12: #{tpu_custom_call.1} parent=1 // pred_region
      %25 = dma.done [#allocation3], 256
    $region13: #{tpu_custom_call.1} parent=1 // pred_fallthru
      _
    %v26 = vld [vmem:[#allocation2] sm:$0xff]
    %v27 = vld [vmem:[#allocation2 + $0x8] sm:$0xff]
    %v28 = vld [vmem:[%s1] sm:$0xf]
    %30 = vset.pattern.permute.xlu0 0
    %31 = vperm.xlu0 %30, %v28
    %v32 = vpop.permute.xlu0 %31
    %v34 = vunpack.c.l.s4 839922192
    %v35 = vunpack.c.0.s8 %v34
    %v36 = vlaneseq
    %v37 = vshrl.u32 %v36, 7
    %v38 = vsub.s32 %v35, %v37
    %v39 = vrot.slane %v32, %v38
    %v41 = vadd.f32 %v26, %v39
    %v42 = vadd.f32 %v27, %v39
    %43 = vst [vmem:[#allocation5] sm:$0xff] %v41
    %44 = vst [vmem:[#allocation5 + $0x8] sm:$0xff] %v42
    // Predicated region
    $region14: #{tpu_custom_call.1} parent=1 // pred_check
      _
    $region15: #{tpu_custom_call.1} parent=1 // pred_check_branch
      %46 = sbr.rel (0) target = $region17
    $region16: #{tpu_custom_call.1} parent=1 // pred_region
      %s48 = ssub.s32 256, 256
      %49 = vsyncadd [#allocation4], %s48
      %s50 = sshll.u32 [#allocation5], 4
      %s51 = int_to_ptr.vmem [resolvable:$true] %s50
      %56 = dma.vmem_to_hbm [thread:$0]  %s51, 256, %s2, [#allocation4], 128, 128, 8
    $region17: #{tpu_custom_call.1} parent=1 // pred_fallthru
      _
    // Predicated region
    $region18: #{tpu_custom_call.1} parent=1 // pred_check
      _
    $region19: #{tpu_custom_call.1} parent=1 // pred_check_branch
      %58 = sbr.rel (0) target = $region21
    $region20: #{tpu_custom_call.1} parent=1 // pred_region
      %59 = dma.done [#allocation4], 256
    $region21: #{tpu_custom_call.1} parent=1 // pred_fallthru
      _
    %60 = vsyncpa [#allocation3], 1
    %61 = vsyncpa [#allocation4], 1

</llo_original>
